<compile_context>
chip_gen: v7x
topology: tpu7x:2x2x1
jax: 0.10.0
libtpu: 0.0.40
codegen_flags: <defaults>
</compile_context>

<pallas_src>
import functools
import math

import numpy as np

import jax
import jax.numpy as jnp
from jax.experimental import pallas as pl
from jax.experimental.pallas import tpu as pltpu


# -----------------------------------------------------------------------------
# Small helpers
# -----------------------------------------------------------------------------

def _round_up(x, m):
    return ((x + m - 1) // m) * m


def box_cxcywh_to_xyxy(x):
    """Plain-JAX reference conversion, used for targets / reference checks."""
    cx, cy, w, h = x[..., 0], x[..., 1], x[..., 2], x[..., 3]
    return jnp.stack([cx - 0.5 * w, cy - 0.5 * h, cx + 0.5 * w, cy + 0.5 * h],
                     axis=-1)


# -----------------------------------------------------------------------------
# Pallas kernel 1: bottleneck linear  y = x @ W^T + b   (bf16 MXU, f32 acc)
# -----------------------------------------------------------------------------

def _bottleneck_kernel(x_ref, w_ref, b_ref, o_ref):
    acc = jnp.dot(x_ref[...], w_ref[...], preferred_element_type=jnp.float32)
    o_ref[...] = (acc + b_ref[...]).astype(o_ref.dtype)


def bottleneck_linear(x, w_pad, b_pad, out_dim, *, tm_single=256, tm_max=2048):
    """x: (M, C); w_pad: (C, Hp) bf16 with Hp % 128 == 0 (pre-padded W^T);
    b_pad: (1, Hp) f32.  Returns (M, out_dim) f32.

    * Output channel dim is already lane-dense (Hp multiple of 128).
    * Small M runs as one grid step (no pipeline overhead); moderate M is
      split into exactly 2 "parallel" steps (v7x dual-TC megacore); large M
      uses tm_max-row tiles.
    """
    M, C = x.shape
    Hp = w_pad.shape[1]

    # bf16 activations: halve the x-tile DMA/VMEM bytes, native-rate MXU.
    x = x.astype(jnp.bfloat16)

    Mp16 = _round_up(M, 16)                       # bf16 sublane packing
    if Mp16 <= tm_single:
        tm, Mp = Mp16, Mp16                       # single step, tiny matmul
    elif Mp16 <= 2 * tm_max:
        tm = _round_up(pl.cdiv(Mp16, 2), 16)      # >=2 steps for v7x megacore
        Mp = 2 * tm
    else:
        tm = tm_max
        Mp = _round_up(Mp16, tm)
    if Mp != M:
        x = jnp.pad(x, ((0, Mp - M), (0, 0)))
    grid = Mp // tm

    out = pl.pallas_call(
        _bottleneck_kernel,
        out_shape=jax.ShapeDtypeStruct((Mp, Hp), jnp.float32),
        grid=(grid,),
        in_specs=[
            pl.BlockSpec((tm, C), lambda i: (i, 0)),
            pl.BlockSpec((C, Hp), lambda i: (0, 0)),
            pl.BlockSpec((1, Hp), lambda i: (0, 0)),
        ],
        out_specs=pl.BlockSpec((tm, Hp), lambda i: (i, 0)),
        compiler_params=pltpu.CompilerParams(
            dimension_semantics=("parallel",)),
    )(x, w_pad, b_pad)
    return out[:M, :out_dim]


# -----------------------------------------------------------------------------
# Pallas kernel 2: q_sample + clamp + rescale + cxcywh->xyxy, lane-dense (4, M)
# -----------------------------------------------------------------------------

def _diffuse_kernel(ab_ref, xs_ref, ns_ref, o_ref, *, scale):
    # ab_ref: (2, T)  row 0 = sqrt_alphas_cumprod[t], row 1 = sqrt(1 - ...)
    # xs_ref / ns_ref: (4, T)  rows = cx, cy, w, h; boxes along the lane axis.
    a = ab_ref[0:1, :]
    b = ab_ref[1:2, :]
    x = (xs_ref[...] * 2.0 - 1.0) * scale          # signal scaling
    x = a * x + b * ns_ref[...]                    # q_sample (sublane bcast)
    x = jnp.clip(x, -scale, scale)                 # clamp
    x = (x / scale + 1.0) * 0.5                    # rescale back to [0, 1]
    cx, cy = x[0:1, :], x[1:2, :]
    hw, hh = 0.5 * x[2:3, :], 0.5 * x[3:4, :]
    # box_cxcywh_to_xyxy as full-row (lane-dense, unmasked) stores.
    o_ref[...] = jnp.concatenate([cx - hw, cy - hh, cx + hw, cy + hh], axis=0)


def diffuse_boxes(x_start, noise, sqrt_a, sqrt_1ma, scale, *, tile=4096):
    """Single pallas_call for the whole batch, lane-dense layout.

    x_start, noise: (B, P, 4) f32 (cxcywh, normalized)
    sqrt_a, sqrt_1ma: (B,) per-batch diffusion coefficients (gathered at t)
    Returns diffused xyxy boxes (B, P, 4) f32.
    """
    B, P, _ = x_start.shape
    M = B * P

    # lane-dense layout: boxes along the 128-lane axis, cx/cy/w/h as sublanes.
    xs = x_start.reshape(M, 4).T.astype(jnp.float32)           # (4, M)
    ns = noise.reshape(M, 4).T.astype(jnp.float32)              # (4, M)
    ab = jnp.stack([jnp.repeat(sqrt_a.astype(jnp.float32), P),
                    jnp.repeat(sqrt_1ma.astype(jnp.float32), P)],
                   axis=0)                                       # (2, M)

    Mp = _round_up(M, 128)
    if Mp <= tile:
        tn = Mp                                                  # single step
    else:
        tn = tile                                                # bounded VMEM
        Mp = _round_up(Mp, tile)
    if Mp != M:
        pad = ((0, 0), (0, Mp - M))
        xs, ns, ab = jnp.pad(xs, pad), jnp.pad(ns, pad), jnp.pad(ab, pad)
    grid = Mp // tn

    out = pl.pallas_call(
        functools.partial(_diffuse_kernel, scale=float(scale)),
        out_shape=jax.ShapeDtypeStruct((4, Mp), jnp.float32),
        grid=(grid,),
        in_specs=[
            pl.BlockSpec((2, tn), lambda i: (0, i)),
            pl.BlockSpec((4, tn), lambda i: (0, i)),
            pl.BlockSpec((4, tn), lambda i: (0, i)),
        ],
        out_specs=pl.BlockSpec((4, tn), lambda i: (0, i)),
        compiler_params=pltpu.CompilerParams(
            dimension_semantics=("parallel",)),
    )(ab, xs, ns)
    return out[:, :M].T.reshape(B, P, 4)


def _diffuse_ref(x_start, noise, sqrt_a, sqrt_1ma, scale):
    """Pure-JAX reference of diffuse_boxes (for correctness checks)."""
    a = sqrt_a[:, None, None].astype(jnp.float32)
    b = sqrt_1ma[:, None, None].astype(jnp.float32)
    x = (x_start * 2.0 - 1.0) * scale
    x = a * x + b * noise
    x = jnp.clip(x, -scale, scale)
    x = (x / scale + 1.0) / 2.0
    return box_cxcywh_to_xyxy(x)


# -----------------------------------------------------------------------------
# Glue: diffusion schedule, positional-embedding table, model wrapper
# -----------------------------------------------------------------------------

def cosine_beta_schedule(timesteps, s=0.008):
    steps = timesteps + 1
    x = np.linspace(0, timesteps, steps, dtype=np.float64)
    alphas_cumprod = np.cos((x / timesteps + s) / (1 + s) * math.pi * 0.5) ** 2
    alphas_cumprod = alphas_cumprod / alphas_cumprod[0]
    betas = 1 - alphas_cumprod[1:] / alphas_cumprod[:-1]
    return np.clip(betas, 0.0, 0.999)


def get_sinusoid_encoding_table(n_position, d_hid):
    pos = np.arange(n_position)[:, None]
    i = np.arange(d_hid)[None, :]
    angle = pos / np.power(10000.0, 2 * (i // 2) / d_hid)
    table = np.zeros((n_position, d_hid), dtype=np.float64)
    table[:, 0::2] = np.sin(angle[:, 0::2])
    table[:, 1::2] = np.cos(angle[:, 1::2])
    return table


class DiffusionTrackPallas:
    def __init__(self, hidden_dim=32, encoder_channels=64,
                 num_patch_x=64, num_patch_z=16,
                 num_frames=1, num_template=1, stride=16,
                 num_proposals=16, feature_type='x', seed=0):
        self.hidden_dim = hidden_dim
        self.encoder_channels = encoder_channels
        self.num_patch_x = num_patch_x
        self.num_patch_z = num_patch_z
        self.num_frames = num_frames
        self.num_template = num_template
        self.stride = stride
        self.side_fx = int(math.sqrt(num_patch_x))
        self.side_fz = int(math.sqrt(num_patch_z))
        self.x_h = self.side_fx * stride
        self.z_h = self.side_fz * stride
        self.num_proposals = num_proposals
        self.scale = 2.0

        # bottleneck = nn.Linear(encoder_channels, hidden_dim), deterministic init
        k = jax.random.PRNGKey(seed)
        kw, kb = jax.random.split(k)
        bound = 1.0 / math.sqrt(encoder_channels)
        # stored as (C, H) == W^T so that y = x @ W_t + b
        self.bottleneck_w = jax.random.uniform(
            kw, (encoder_channels, hidden_dim), jnp.float32, -bound, bound)
        self.bottleneck_b = jax.random.uniform(
            kb, (hidden_dim,), jnp.float32, -bound, bound)

        # pre-padded / pre-cast kernel operands (pad once here, not per call):
        Hp = _round_up(hidden_dim, 128)
        self._hp = Hp
        self.bottleneck_w_pad = jnp.pad(
            self.bottleneck_w, ((0, 0), (0, Hp - hidden_dim))).astype(jnp.bfloat16)
        self.bottleneck_b_pad = jnp.pad(
            self.bottleneck_b, (0, Hp - hidden_dim)).reshape(1, Hp)

        # positional embedding (sinusoid), feature_type == 'x'
        assert feature_type == 'x'
        num_patches = num_patch_x * num_frames
        self.pos_embed = jnp.asarray(
            get_sinusoid_encoding_table(num_patches, hidden_dim),
            dtype=jnp.float32)[None]

        # diffusion buffers
        timesteps = 1000
        betas = cosine_beta_schedule(timesteps)
        alphas = 1.0 - betas
        alphas_cumprod = np.cumprod(alphas, axis=0)
        alphas_cumprod_prev = np.concatenate([[1.0], alphas_cumprod[:-1]])
        self.num_timesteps = int(timesteps)
        self.betas = jnp.asarray(betas, jnp.float32)
        self.alphas_cumprod = jnp.asarray(alphas_cumprod, jnp.float32)
        self.alphas_cumprod_prev = jnp.asarray(alphas_cumprod_prev, jnp.float32)
        self.sqrt_alphas_cumprod = jnp.asarray(np.sqrt(alphas_cumprod),
                                               jnp.float32)
        self.sqrt_one_minus_alphas_cumprod = jnp.asarray(
            np.sqrt(1.0 - alphas_cumprod), jnp.float32)
        self.sqrt_recip_alphas_cumprod = jnp.asarray(
            np.sqrt(1.0 / alphas_cumprod), jnp.float32)
        self.sqrt_recipm1_alphas_cumprod = jnp.asarray(
            np.sqrt(1.0 / alphas_cumprod - 1.0), jnp.float32)

    # --- forward dispatch, mirroring the PyTorch module ---
    def forward(self, images_list=None, xz=None, boxes=None, mode='encoder',
                t=None, targets=None, key=None):
        if mode == 'decoder':
            return self.forward_decoder(xz, boxes, t)
        elif mode == 'prepare_target':
            return self.prepare_targets(targets, key)
        else:
            raise ValueError("only 'decoder' and 'prepare_target' modes are "
                             "implemented in this synthetic kernel")

    def forward_decoder(self, xz, boxes, t):
        # mirror the PyTorch unwrapping: dict -> [dict['xz']];
        # list (possibly of dicts) -> [list[0]['xz']]
        if isinstance(xz, dict):
            xz = [xz['xz']]
        if isinstance(xz, list):
            if isinstance(xz[0], dict):
                xz = [xz[0]['xz']]
        xz_mem = xz[-1] if isinstance(xz, list) else xz
        B, N, C = xz_mem.shape
        dec_mem = xz_mem[:, 0:self.num_patch_x * self.num_frames]
        if dec_mem.shape[-1] != self.hidden_dim:
            flat = dec_mem.reshape(-1, C)
            flat = bottleneck_linear(flat, self.bottleneck_w_pad,
                                     self.bottleneck_b_pad, self.hidden_dim)
            dec_mem = flat.reshape(B, self.num_patch_x * self.num_frames,
                                   self.hidden_dim)
        # TODO(synk): DynamicHead (outputs_class / outputs_coord) is an
        # external module not defined in this file; return the head input.
        return dec_mem

    # --- diffusion target preparation -----------------------------------
    def prepare_diffusion_concat(self, gt_boxes, key):
        """Single-sample path (API parity); batched path is prepare_targets."""
        kt, kn, kp = jax.random.split(key, 3)
        t = jax.random.randint(kt, (1,), 0, self.num_timesteps)
        noise = jax.random.normal(kn, (self.num_proposals, 4), jnp.float32)
        num_gt = gt_boxes.shape[0]
        if num_gt < self.num_proposals:
            placeholder = jax.random.normal(
                kp, (self.num_proposals - num_gt, 4), jnp.float32) / 6.0 + 0.5
            placeholder = placeholder.at[:, 2:].set(
                jnp.maximum(placeholder[:, 2:], 1e-4))
            x_start = jnp.concatenate([gt_boxes, placeholder], axis=0)
        else:
            x_start = gt_boxes[:self.num_proposals]
        sqrt_a = self.sqrt_alphas_cumprod[t]
        sqrt_1ma = self.sqrt_one_minus_alphas_cumprod[t]
        diff_boxes = diffuse_boxes(x_start[None], noise[None],
                                   sqrt_a, sqrt_1ma, self.scale)[0]
        return diff_boxes, noise, t

    def prepare_targets(self, targets_input, key):
        bs = targets_input.shape[0]
        P = self.num_proposals
        kt, kn, kp = jax.random.split(key, 3)

        # one RNG draw + ONE fused pallas_call for the whole batch
        ts = jax.random.randint(kt, (bs,), 0, self.num_timesteps)
        noise = jax.random.normal(kn, (bs, P, 4), jnp.float32)
        placeholder = jax.random.normal(kp, (bs, P - 1, 4),
                                        jnp.float32) / 6.0 + 0.5
        placeholder = placeholder.at[..., 2:].set(
            jnp.maximum(placeholder[..., 2:], 1e-4))
        x_start = jnp.concatenate([targets_input[:, None, :], placeholder],
                                  axis=1)                      # (bs, P, 4)

        sqrt_a = self.sqrt_alphas_cumprod[ts]
        sqrt_1ma = self.sqrt_one_minus_alphas_cumprod[ts]
        diff_boxes = diffuse_boxes(x_start, noise, sqrt_a, sqrt_1ma,
                                   self.scale)                 # (bs, P, 4)

        new_targets = []
        h = w = self.side_fx * self.stride
        whwh = jnp.array([w, h, w, h], jnp.float32)
        for i in range(bs):
            gt = targets_input[i:i + 1, :]
            xyxy_abs = box_cxcywh_to_xyxy(gt) * h
            area = (xyxy_abs[0, 2] - xyxy_abs[0, 0]) * \
                   (xyxy_abs[0, 3] - xyxy_abs[0, 1])
            new_targets.append({
                'labels': jnp.array([0], jnp.int32),
                'boxes': gt,
                'boxes_xyxy': xyxy_abs,
                'image_size_xyxy': whwh,
                'image_size_xyxy_tgt': jnp.tile(whwh[None], (gt.shape[0], 1)),
                'area': jnp.tile(area[None], (gt.shape[0],)),
            })
        return new_targets, diff_boxes, noise, ts


# -----------------------------------------------------------------------------
# Driver
# -----------------------------------------------------------------------------

if __name__ == "__main__":
    B = 2
    model = DiffusionTrackPallas(hidden_dim=32, encoder_channels=64,
                                 num_patch_x=64, num_patch_z=16,
                                 num_proposals=16, seed=0)

    key = jax.random.PRNGKey(0)
    k_xz, k_prep, k_chk = jax.random.split(key, 3)
    N_total = model.num_patch_x + model.num_patch_z          # 80 tokens
    xz_mem = jax.random.normal(k_xz, (B, N_total, model.encoder_channels),
                               jnp.float32)

    # ---- decoder-mode forward (bottleneck matmul kernel, bf16 MXU inputs) ----
    dec_feat = model.forward(xz=[{'xz': xz_mem}], mode='decoder')
    dec_feat = jax.block_until_ready(dec_feat)

    dec_mem_ref = xz_mem[:, :model.num_patch_x]
    ref = dec_mem_ref.reshape(-1, model.encoder_channels) @ model.bottleneck_w \
        + model.bottleneck_b
    ref = ref.reshape(B, model.num_patch_x, model.hidden_dim)
    # bf16-input MXU vs f32 reference: tolerance loosened accordingly (K=64).
    np.testing.assert_allclose(np.asarray(dec_feat), np.asarray(ref),
                               rtol=2e-2, atol=2e-2)

    # ---- standalone correctness check for the fused diffusion kernel ----
    k1, k2, k3 = jax.random.split(k_chk, 3)
    xs_t = jax.random.uniform(k1, (B, model.num_proposals, 4), jnp.float32)
    n_t = jax.random.normal(k2, (B, model.num_proposals, 4), jnp.float32)
    tt = jax.random.randint(k3, (B,), 0, model.num_timesteps)
    sa = model.sqrt_alphas_cumprod[tt]
    sb = model.sqrt_one_minus_alphas_cumprod[tt]
    out_k = jax.block_until_ready(diffuse_boxes(xs_t, n_t, sa, sb, model.scale))
    out_r = _diffuse_ref(xs_t, n_t, sa, sb, model.scale)
    np.testing.assert_allclose(np.asarray(out_k), np.asarray(out_r),
                               rtol=1e-5, atol=1e-5)

    # ---- prepare_target-mode forward (single batched diffusion call) ----
    gt_boxes = jnp.array([[0.5, 0.5, 0.4, 0.3],
                          [0.3, 0.6, 0.2, 0.2]], jnp.float32)   # (B, 4) cxcywh
    new_targets, diff_boxes, noises, ts = model.forward(
        targets=gt_boxes, mode='prepare_target', key=k_prep)
    diff_boxes = jax.block_until_ready(diff_boxes)

    assert dec_feat.shape == (B, model.num_patch_x, model.hidden_dim)
    assert diff_boxes.shape == (B, model.num_proposals, 4)
    assert noises.shape == (B, model.num_proposals, 4)
    assert ts.shape == (B,)
    assert len(new_targets) == B
    print("KERNEL_OK")
</pallas_src>

<mosaic_0001>
module attributes {stable_mosaic.version = 11 : i64} {
  func.func @_bottleneck_kernel(%arg0: i32, %arg1: memref<128x64xbf16, #tpu.memory_space<vmem>>, %arg2: memref<64x128xbf16, #tpu.memory_space<vmem>>, %arg3: memref<1x128xf32, #tpu.memory_space<vmem>>, %arg4: memref<128x128xf32, #tpu.memory_space<vmem>>) attributes {dimension_semantics = [#tpu.dimension_semantics<parallel>], iteration_bounds = array<i64: 1>, scalar_prefetch = 0 : i64, scratch_operands = 0 : i64, tpu.core_type = #tpu.core_type<tc>, window_params = [{transform_indices = @transform_0, window_bounds = array<i64: 128, 64>}, {pipeline_mode = #tpu.pipeline_mode<synchronous>, transform_indices = @transform_1, window_bounds = array<i64: 64, 128>}, {pipeline_mode = #tpu.pipeline_mode<synchronous>, transform_indices = @transform_2, window_bounds = array<i64: 1, 128>}, {transform_indices = @transform_3, window_bounds = array<i64: 128, 128>}]} {
    %c0 = arith.constant 0 : index
    %c0_0 = arith.constant 0 : index
    %0 = vector.load %arg1[%c0, %c0_0] : memref<128x64xbf16, #tpu.memory_space<vmem>>, vector<128x64xbf16>
    %c0_1 = arith.constant 0 : index
    %c0_2 = arith.constant 0 : index
    %1 = vector.load %arg2[%c0_1, %c0_2] : memref<64x128xbf16, #tpu.memory_space<vmem>>, vector<64x128xbf16>
    %cst = arith.constant dense<0.000000e+00> : vector<128x128xf32>
    %2 = tpu.matmul %0, %1, %cst {dimension_numbers = #tpu.dot_dimension_numbers<[1], [0], [0], [1], [0, 0, 1, 1], [], []>} : vector<128x64xbf16>, vector<64x128xbf16>, vector<128x128xf32> -> vector<128x128xf32>
    %c0_3 = arith.constant 0 : index
    %c0_4 = arith.constant 0 : index
    %3 = vector.load %arg3[%c0_3, %c0_4] : memref<1x128xf32, #tpu.memory_space<vmem>>, vector<1x128xf32>
    %4 = vector.broadcast %3 : vector<1x128xf32> to vector<128x128xf32>
    %5 = arith.addf %2, %4 : vector<128x128xf32>
    %c0_5 = arith.constant 0 : index
    %c0_6 = arith.constant 0 : index
    %6 = vector.load %arg4[%c0_5, %c0_6] : memref<128x128xf32, #tpu.memory_space<vmem>>, vector<128x128xf32>
    tpu.vector_store %arg4[%c0_5, %c0_6], %5 {strides = array<i32>} : memref<128x128xf32, #tpu.memory_space<vmem>>, vector<128x128xf32>,
    return
  }
  func.func @transform_0(%arg0: i32) -> (i32, i32) {
    %c0_i32 = arith.constant 0 : i32
    %c0_i32_0 = arith.constant 0 : i32
    return %arg0, %c0_i32 : i32, i32
  }
  func.func @transform_1(%arg0: i32) -> (i32, i32) {
    %c0_i32 = arith.constant 0 : i32
    %c0_i32_0 = arith.constant 0 : i32
    %c0_i32_1 = arith.constant 0 : i32
    return %c0_i32, %c0_i32_0 : i32, i32
  }
  func.func @transform_2(%arg0: i32) -> (i32, i32) {
    %c0_i32 = arith.constant 0 : i32
    %c0_i32_0 = arith.constant 0 : i32
    %c0_i32_1 = arith.constant 0 : i32
    return %c0_i32, %c0_i32_0 : i32, i32
  }
  func.func @transform_3(%arg0: i32) -> (i32, i32) {
    %c0_i32 = arith.constant 0 : i32
    %c0_i32_0 = arith.constant 0 : i32
    return %arg0, %c0_i32 : i32, i32
  }
}

</mosaic_0001>

<llo_original>
// kernel: tpu_custom_call.1
$region0: #{tpu_custom_call.1}
  #allocation0 [shape = 'u32[]', space=smem, size = 0x4, offset = 0x4, fixed_abs, tag = 'smem constant byte address 0x4 - core index']
  #allocation1 [shape = 'u32[144,128]{1,0:T(1,128)}', space=vmem, size = 0x12000, scoped, tag = 'internal scratch']
  %s0 = inlined_call_operand.vmem [shape: bf16[128,64], index: 0, kind: input, shape index: {}]
  %s1 = inlined_call_operand.vmem [shape: bf16[64,128], index: 1, kind: input, shape index: {}]
  %s2 = inlined_call_operand.vmem [shape: f32[1,128], index: 2, kind: input, shape index: {}]
  %s3 = inlined_call_operand.hbm [shape: f32[128,128], index: 3, kind: output, shape index: {}]
  %s4 = sld [smem:[#allocation0]]
  $region22: #{tpu_custom_call.1} parent=0
    _
  %s6 = ssub.s32 1, %s4
  %s7 = scalar_select 0, %s6, %s4
  $region1: #{tpu_custom_call.1} parent=0
    #allocation2 [shape = 'u8[65536]{0}', space=vmem, size = 0x10000, scoped, tag = 'output window, operand 0, single buffered']
    #allocation3 [shape = 's32[1]{0}', space=sflag, size = 0x4, scoped, tag = 'scoped memory for tpu_custom_call.1']
    %8 = vsyncpa [#allocation3], 0
    // Predicated region
    $region2: #{tpu_custom_call.1} parent=1 // pred_check
      _
    $region3: #{tpu_custom_call.1} parent=1 // pred_check_branch
      %10 = sbr.rel (0) target = $region5
    $region4: #{tpu_custom_call.1} parent=1 // pred_region
      _
    $region5: #{tpu_custom_call.1} parent=1 // pred_fallthru
      _
    // Predicated region
    $region6: #{tpu_custom_call.1} parent=1 // pred_check
      _
    $region7: #{tpu_custom_call.1} parent=1 // pred_check_branch
      %12 = sbr.rel (0) target = $region9
    $region8: #{tpu_custom_call.1} parent=1 // pred_region
      _
    $region9: #{tpu_custom_call.1} parent=1 // pred_fallthru
      _
    // Predicated region
    $region10: #{tpu_custom_call.1} parent=1 // pred_check
      _
    $region11: #{tpu_custom_call.1} parent=1 // pred_check_branch
      %14 = sbr.rel (0) target = $region13
    $region12: #{tpu_custom_call.1} parent=1 // pred_region
      _
    $region13: #{tpu_custom_call.1} parent=1 // pred_fallthru
      _
    %v16 = vld [vmem:[%s0] sm:$0xf]
    %v17 = vld [vmem:[%s0 + $0x4] sm:$0xf]
    %v18 = vld [vmem:[%s0 + $0x8] sm:$0xf]
    %v19 = vld [vmem:[%s0 + $0xc] sm:$0xf]
    %v20 = vld [vmem:[%s0 + $0x10] sm:$0xf]
    %v21 = vld [vmem:[%s0 + $0x14] sm:$0xf]
    %v22 = vld [vmem:[%s0 + $0x18] sm:$0xf]
    %v23 = vld [vmem:[%s0 + $0x1c] sm:$0xf]
    %v24 = vld [vmem:[%s0 + $0x20] sm:$0xf]
    %v25 = vld [vmem:[%s0 + $0x24] sm:$0xf]
    %v26 = vld [vmem:[%s0 + $0x28] sm:$0xf]
    %v27 = vld [vmem:[%s0 + $0x2c] sm:$0xf]
    %v28 = vld [vmem:[%s0 + $0x30] sm:$0xf]
    %v29 = vld [vmem:[%s0 + $0x34] sm:$0xf]
    %v30 = vld [vmem:[%s0 + $0x38] sm:$0xf]
    %v31 = vld [vmem:[%s0 + $0x3c] sm:$0xf]
    %v32 = vld [vmem:[%s1] sm:$0xf]
    %v33 = vld [vmem:[%s1 + $0x4] sm:$0xf]
    %v34 = vld [vmem:[%s1 + $0x8] sm:$0xf]
    %v35 = vld [vmem:[%s1 + $0xc] sm:$0xf]
    %v36 = vld [vmem:[%s1 + $0x10] sm:$0xf]
    %v37 = vld [vmem:[%s1 + $0x14] sm:$0xf]
    %v38 = vld [vmem:[%s1 + $0x18] sm:$0xf]
    %v39 = vld [vmem:[%s1 + $0x1c] sm:$0xf]
    %v40 = vld [vmem:[%s2] sm:$0x1]
    %v42 = vlaneseq
    %v43 = vshrl.u32 %v42, 7
    %v44 = vsub.s32 0, %v43
    %v45 = vrot.slane %v40, %v44
    %v63 = vunpack.c.l.b16 %v16
    %v64 = vunpack.c.l.b16 %v17
    %v65 = vunpack.c.l.b16 %v18
    %v66 = vunpack.c.l.b16 %v19
    %v67 = vunpack.c.l.b16 %v20
    %v68 = vunpack.c.l.b16 %v21
    %v69 = vunpack.c.l.b16 %v22
    %v70 = vunpack.c.l.b16 %v23
    %v71 = vunpack.c.l.b16 %v24
    %v72 = vunpack.c.l.b16 %v25
    %v73 = vunpack.c.l.b16 %v26
    %v74 = vunpack.c.l.b16 %v27
    %v75 = vunpack.c.l.b16 %v28
    %v76 = vunpack.c.l.b16 %v29
    %v77 = vunpack.c.l.b16 %v30
    %v78 = vunpack.c.l.b16 %v31
    %v79 = vpack.c.b16 %v64, %v63
    %v80 = vpack.c.b16 %v66, %v65
    %v81 = vpack.c.b16 %v68, %v67
    %v82 = vpack.c.b16 %v70, %v69
    %v83 = vpack.c.b16 %v72, %v71
    %v84 = vpack.c.b16 %v74, %v73
    %v85 = vpack.c.b16 %v76, %v75
    %v86 = vpack.c.b16 %v78, %v77
    %v95 = vunpack.c.l.b16 %v32
    %v96 = vunpack.c.l.b16 %v33
    %v97 = vunpack.c.l.b16 %v34
    %v98 = vunpack.c.l.b16 %v35
    %v99 = vunpack.c.l.b16 %v36
    %v100 = vunpack.c.l.b16 %v37
    %v101 = vunpack.c.l.b16 %v38
    %v102 = vunpack.c.l.b16 %v39
    %v103 = vpack.c.b16 %v96, %v95
    %v104 = vpack.c.b16 %v98, %v97
    %v105 = vpack.c.b16 %v100, %v99
    %v106 = vpack.c.b16 %v102, %v101
    %vm111 = vcmask 523264
    %v113 = vsel %vm111, %v79, 0
    %v116 = vsel %vm111, %v80, 0
    %v119 = vsel %vm111, %v81, 0
    %v122 = vsel %vm111, %v82, 0
    %v125 = vsel %vm111, %v83, 0
    %v128 = vsel %vm111, %v84, 0
    %v131 = vsel %vm111, %v85, 0
    %v134 = vsel %vm111, %v86, 0
    %136 = vmatprep.subr.bf16.mxu0 0
    %137 = vmatpush1.bf16.msra.mxu0 %v103
    %138 = vmatprep.subr.bf16.mxu0 0
    %139 = vmatpush1.bf16.msra.mxu0 %v104
    %140 = vmatprep.subr.bf16.mxu0 0
    %141 = vmatpush1.bf16.msra.mxu0 %v105
    %142 = vmatprep.subr.bf16.mxu0 0
    %143 = vmatpush1.bf16.msra.mxu0 %v106
    %144 = vmatprep.subr.bf16.mxu0 0
    %145 = vmatpush1.bf16.msra.mxu0 0
    %146 = vmatprep.subr.bf16.mxu0 0
    %147 = vmatpush1.bf16.msra.mxu0 0
    %148 = vmatprep.subr.bf16.mxu0 0
    %149 = vmatpush1.bf16.msra.mxu0 0
    %150 = vmatprep.subr.bf16.mxu0 0
    %151 = vmatpush1.bf16.msra.mxu0 0
    %152 = vmatprep.subr.bf16.mxu0 0
    %153 = vmatpush1.bf16.msra.mxu0 0
    %154 = vmatprep.subr.bf16.mxu0 0
    %155 = vmatpush1.bf16.msra.mxu0 0
    %156 = vmatprep.subr.bf16.mxu0 0
    %157 = vmatpush1.bf16.msra.mxu0 0
    %158 = vmatprep.subr.bf16.mxu0 0
    %159 = vmatpush1.bf16.msra.mxu0 0
    %160 = vmatprep.subr.bf16.mxu0 0
    %161 = vmatpush1.bf16.msra.mxu0 0
    %162 = vmatprep.subr.bf16.mxu0 0
    %163 = vmatpush1.bf16.msra.mxu0 0
    %164 = vmatprep.subr.bf16.mxu0 0
    %165 = vmatpush1.bf16.msra.mxu0 0
    %166 = vmatprep.subr.bf16.mxu0 0
    %167 = vmatpush1.bf16.msra.mxu0 0
    %168 = vmatprep.mubr.bf16.mxu0 0
    %169 = vmatmul.mubr.bf16.gmra.mrb[0].mxu0 %v113
    %v170 = vpop.f32.mrb[0].mxu0
    %v171 = vadd.f32 %v45, %v170
    %v172 = vpop.f32.mrb[0].mxu0
    %v173 = vpop.f32.mrb[0].mxu0
    %v174 = vadd.f32 %v45, %v173
    %v175 = vpop.f32.mrb[0].mxu0
    %176 = vmatprep.mubr.bf16.mxu0 0
    %177 = vmatmul.mubr.bf16.gmra.mrb[0].mxu0 %v116
    %v178 = vpop.f32.mrb[0].mxu0
    %v179 = vadd.f32 %v45, %v178
    %v180 = vpop.f32.mrb[0].mxu0
    %v181 = vpop.f32.mrb[0].mxu0
    %v182 = vadd.f32 %v45, %v181
    %v183 = vpop.f32.mrb[0].mxu0
    %184 = vmatprep.mubr.bf16.mxu0 0
    %185 = vmatmul.mubr.bf16.gmra.mrb[0].mxu0 %v119
    %v186 = vpop.f32.mrb[0].mxu0
    %v187 = vadd.f32 %v45, %v186
    %v188 = vpop.f32.mrb[0].mxu0
    %v189 = vpop.f32.mrb[0].mxu0
    %v190 = vadd.f32 %v45, %v189
    %v191 = vpop.f32.mrb[0].mxu0
    %192 = vmatprep.mubr.bf16.mxu0 0
    %193 = vmatmul.mubr.bf16.gmra.mrb[0].mxu0 %v122
    %v194 = vpop.f32.mrb[0].mxu0
    %v195 = vadd.f32 %v45, %v194
    %v196 = vpop.f32.mrb[0].mxu0
    %v197 = vpop.f32.mrb[0].mxu0
    %v198 = vadd.f32 %v45, %v197
    %v199 = vpop.f32.mrb[0].mxu0
    %200 = vmatprep.mubr.bf16.mxu0 0
    %201 = vmatmul.mubr.bf16.gmra.mrb[0].mxu0 %v125
    %v202 = vpop.f32.mrb[0].mxu0
    %v203 = vadd.f32 %v45, %v202
    %v204 = vpop.f32.mrb[0].mxu0
    %v205 = vpop.f32.mrb[0].mxu0
    %v206 = vadd.f32 %v45, %v205
    %v207 = vpop.f32.mrb[0].mxu0
    %208 = vmatprep.mubr.bf16.mxu0 0
    %209 = vmatmul.mubr.bf16.gmra.mrb[0].mxu0 %v128
    %v210 = vpop.f32.mrb[0].mxu0
    %v211 = vadd.f32 %v45, %v210
    %v212 = vpop.f32.mrb[0].mxu0
    %v213 = vpop.f32.mrb[0].mxu0
    %v214 = vadd.f32 %v45, %v213
    %v215 = vpop.f32.mrb[0].mxu0
    %216 = vmatprep.mubr.bf16.mxu0 0
    %217 = vmatmul.mubr.bf16.gmra.mrb[0].mxu0 %v131
    %v218 = vpop.f32.mrb[0].mxu0
    %v219 = vadd.f32 %v45, %v218
    %v220 = vpop.f32.mrb[0].mxu0
    %v221 = vpop.f32.mrb[0].mxu0
    %v222 = vadd.f32 %v45, %v221
    %v223 = vpop.f32.mrb[0].mxu0
    %224 = vmatprep.mubr.bf16.mxu0 0
    %225 = vmatmul.mubr.bf16.gmra.mrb[0].mxu0 %v134
    %v226 = vpop.f32.mrb[0].mxu0
    %v227 = vadd.f32 %v45, %v226
    %v228 = vpop.f32.mrb[0].mxu0
    %v229 = vpop.f32.mrb[0].mxu0
    %v230 = vadd.f32 %v45, %v229
    %v231 = vpop.f32.mrb[0].mxu0
    %232 = vdwg.mxu0
    %233 = vst [vmem:[#allocation2] sm:$0xff] %v171
    %234 = vst [vmem:[#allocation2 + $0x8] sm:$0xff] %v174
    %235 = vst [vmem:[#allocation2 + $0x10] sm:$0xff] %v179
    %236 = vst [vmem:[#allocation2 + $0x18] sm:$0xff] %v182
    %237 = vst [vmem:[#allocation2 + $0x20] sm:$0xff] %v187
    %238 = vst [vmem:[#allocation2 + $0x28] sm:$0xff] %v190
    %239 = vst [vmem:[#allocation2 + $0x30] sm:$0xff] %v195
    %240 = vst [vmem:[#allocation2 + $0x38] sm:$0xff] %v198
    %241 = vst [vmem:[#allocation2 + $0x40] sm:$0xff] %v203
    %242 = vst [vmem:[#allocation2 + $0x48] sm:$0xff] %v206
    %243 = vst [vmem:[#allocation2 + $0x50] sm:$0xff] %v211
    %244 = vst [vmem:[#allocation2 + $0x58] sm:$0xff] %v214
    %245 = vst [vmem:[#allocation2 + $0x60] sm:$0xff] %v219
    %246 = vst [vmem:[#allocation2 + $0x68] sm:$0xff] %v222
    %247 = vst [vmem:[#allocation2 + $0x70] sm:$0xff] %v227
    %248 = vst [vmem:[#allocation2 + $0x78] sm:$0xff] %v230
    // Predicated region
    $region14: #{tpu_custom_call.1} parent=1 // pred_check
      _
    $region15: #{tpu_custom_call.1} parent=1 // pred_check_branch
      %250 = sbr.rel (0) target = $region17
    $region16: #{tpu_custom_call.1} parent=1 // pred_region
      %s252 = ssub.s32 2048, 2048
      %253 = vsyncadd [#allocation3], %s252
      %s254 = sshll.u32 [#allocation2], 4
      %s255 = int_to_ptr.vmem [resolvable:$true] %s254
      %260 = dma.vmem_to_hbm [thread:$0]  %s255, 2048, %s3, [#allocation3], 128, 128, 8
    $region17: #{tpu_custom_call.1} parent=1 // pred_fallthru
      _
    // Predicated region
    $region18: #{tpu_custom_call.1} parent=1 // pred_check
      _
    $region19: #{tpu_custom_call.1} parent=1 // pred_check_branch
      %262 = sbr.rel (0) target = $region21
    $region20: #{tpu_custom_call.1} parent=1 // pred_region
      %263 = dma.done [#allocation3], 2048
    $region21: #{tpu_custom_call.1} parent=1 // pred_fallthru
      _
    %264 = vsyncpa [#allocation3], 1

</llo_original>
